<compile_context>
chip_gen: v5e
topology: v5e:2x2
jax: 0.10.0
libtpu: 0.0.40
codegen_flags: <defaults>
</compile_context>

<pallas_src>
import functools

import jax
import jax.numpy as jnp
from jax.experimental import pallas as pl
from jax.experimental.pallas import tpu as pltpu


# ----------------------------------------------------------------------------
# Kernel
# ----------------------------------------------------------------------------
def _policy_kernel(x_ref, w1_ref, b1_ref, w23_ref, b23_ref, out_ref):
    # In-kernel bf16 cast of x (rides VPU slack); MXU matmul with f32 acc.
    x = x_ref[...].astype(w1_ref.dtype)                          # [TB, D] bf16
    h = jnp.dot(x, w1_ref[...], preferred_element_type=jnp.float32)
    # f32 bias + ReLU epilogue (kept f32 on purpose: v5e has no bf16 VPU).
    h = jnp.maximum(h + b1_ref[...], 0.0)                        # [TB, H] f32
    # Fused mu|sigma head: ONE MXU matmul into a lane-dense [TB, P] slab,
    # ONE unmasked dense store (instead of two masked 4-lane writebacks).
    out = jnp.dot(h.astype(w23_ref.dtype), w23_ref[...],
                  preferred_element_type=jnp.float32)
    out_ref[...] = (out + b23_ref[...]).astype(out_ref.dtype)


# ----------------------------------------------------------------------------
# One-time parameter prep (hoisted out of the per-step forward path)
# ----------------------------------------------------------------------------
def prepare_policy_params(w1, b1, w2, b2, w3, b3):
    """Fuse the two heads into a lane-dense padded slab and pre-cast weights.

    w*: [in, out] (already transposed from PyTorch layout); b*: [1, out].
    Call ONCE at init / after each optimizer step, not per forward.
    """
    D, H = w1.shape
    A = w2.shape[1]
    P = max(128, pl.cdiv(2 * A, 128) * 128)                      # lane-dense width
    w23 = jnp.pad(jnp.concatenate([w2, w3], axis=1), ((0, 0), (0, P - 2 * A)))
    b23 = jnp.pad(jnp.concatenate([b2, b3], axis=1), ((0, 0), (0, P - 2 * A)))
    return {
        "w1": w1.astype(jnp.bfloat16),        # MXU operand
        "b1": b1.astype(jnp.float32),         # f32 epilogue
        "w23": w23.astype(jnp.bfloat16),      # fused, padded MXU operand
        "b23": b23.astype(jnp.float32),
        "D": int(D), "H": int(H), "A": int(A), "P": int(P),
    }


def _batch_tile(B):
    """<=128: single tile.  >128: >=2 tiles (v7x dual-TC), capped at 256 rows
    (keeps the [TB,128] f32 epilogue under ~32 vregs), rounded to sublane=8."""
    if B <= 128:
        return B
    half = (B + 1) // 2
    half = ((half + 7) // 8) * 8
    return min(256, half)


# ----------------------------------------------------------------------------
# Forward
# ----------------------------------------------------------------------------
def policy_forward(x, params, *, out_dtype=jnp.float32, force_pallas=False):
    """x: [B, num_inputs] f32 -> (mu, sigma_sq), each [B, A] in `out_dtype`."""
    B, D = x.shape
    A, P, H = params["A"], params["P"], params["H"]
    w1, b1, w23, b23 = params["w1"], params["b1"], params["w23"], params["b23"]

    # Tiny-batch fast path: a 3-op MLP this small is faster as fused XLA HLO
    # than as a custom call (launch + 4 DMAs dominate ~10 Kflops of work).
    if B <= 64 and not force_pallas:
        h = jnp.maximum(
            jnp.dot(x.astype(jnp.bfloat16), w1,
                    preferred_element_type=jnp.float32) + b1, 0.0)
        out = jnp.dot(h.astype(jnp.bfloat16), w23,
                      preferred_element_type=jnp.float32) + b23
        out = out.astype(out_dtype)
        return out[:, :A], out[:, A:2 * A]

    TB = _batch_tile(B)
    nb = pl.cdiv(B, TB)                          # ragged last tile is masked

    # Constant-index weight specs: single-buffer only when footprint matters
    # (v7x VMEM headroom); at small H this stays on the default path.
    weight_bytes = (w1.size + w23.size) * 2
    if weight_bytes > (4 << 20):
        def _wspec(shape):
            return pl.BlockSpec(shape, lambda i: (0, 0),
                                pipeline_mode=pl.Buffered(1))
    else:
        def _wspec(shape):
            return pl.BlockSpec(shape, lambda i: (0, 0))

    out_bytes = jnp.dtype(out_dtype).itemsize
    cost = pl.CostEstimate(
        flops=2 * B * (D * H + H * 2 * A),       # true head width, not padded P
        transcendentals=0,
        bytes_accessed=(x.size * 4 + w1.size * 2 + w23.size * 2
                        + b1.size * 4 + b23.size * 4 + B * P * out_bytes),
    )

    out = pl.pallas_call(
        _policy_kernel,
        out_shape=jax.ShapeDtypeStruct((B, P), out_dtype),
        grid=(nb,),
        in_specs=[
            pl.BlockSpec((TB, D), lambda i: (i, 0)),   # x: tiled over batch
            _wspec((D, H)),                            # W1: VMEM-resident
            _wspec((1, H)),                            # b1
            _wspec((H, P)),                            # fused W2|W3 (padded)
            _wspec((1, P)),                            # fused b2|b3 (padded)
        ],
        out_specs=pl.BlockSpec((TB, P), lambda i: (i, 0)),
        compiler_params=pltpu.CompilerParams(dimension_semantics=("parallel",)),
        cost_estimate=cost,
    )(x, w1, b1, w23, b23)

    # Slice the lane-dense slab back into the two module outputs.
    return out[:, :A], out[:, A:2 * A]


# ----------------------------------------------------------------------------
# Helpers / demo
# ----------------------------------------------------------------------------
def init_linear_params(key, in_features, out_features):
    """nn.Linear default init U(-1/sqrt(fan_in), 1/sqrt(fan_in)); weight is
    returned pre-transposed to [in, out], bias as [1, out]."""
    kw, kb = jax.random.split(key)
    bound = 1.0 / (in_features ** 0.5)
    w = jax.random.uniform(kw, (in_features, out_features), jnp.float32,
                           minval=-bound, maxval=bound)
    b = jax.random.uniform(kb, (1, out_features), jnp.float32,
                           minval=-bound, maxval=bound)
    return w, b


def _bf16_recipe_reference(x, params):
    """Same bf16-operand / f32-accumulate recipe as the kernel (tight check)."""
    A = params["A"]
    h = jnp.maximum(
        jnp.dot(x.astype(jnp.bfloat16), params["w1"],
                preferred_element_type=jnp.float32) + params["b1"], 0.0)
    out = jnp.dot(h.astype(jnp.bfloat16), params["w23"],
                  preferred_element_type=jnp.float32) + params["b23"]
    return out[:, :A], out[:, A:2 * A]


if __name__ == "__main__":
    # Small shapes implied by Policy(hidden_size, num_inputs, action_space).
    batch = 8
    num_inputs = 16
    hidden_size = 32
    num_outputs = 4   # action_space.shape[0]

    key = jax.random.PRNGKey(0)
    k_x, k1, k2, k3 = jax.random.split(key, 4)

    x = jax.random.normal(k_x, (batch, num_inputs), jnp.float32)
    w1, b1 = init_linear_params(k1, num_inputs, hidden_size)    # linear1
    w2, b2 = init_linear_params(k2, hidden_size, num_outputs)   # linear2   (mu)
    w3, b3 = init_linear_params(k3, hidden_size, num_outputs)   # linear2_  (sigma_sq)

    # ---- one-time parameter prep (hoisted out of the forward path) ----------
    params = prepare_policy_params(w1, b1, w2, b2, w3, b3)

    # ---- 1) small batch, Pallas path forced so the kernel is exercised ------
    mu, sigma_sq = policy_forward(x, params, force_pallas=True)
    jax.block_until_ready((mu, sigma_sq))
    assert mu.shape == (batch, num_outputs) and sigma_sq.shape == (batch, num_outputs)

    mu_ref, sg_ref = _bf16_recipe_reference(x, params)
    assert jnp.allclose(mu, mu_ref, atol=1e-4, rtol=1e-4), "mu mismatch (tight)"
    assert jnp.allclose(sigma_sq, sg_ref, atol=1e-4, rtol=1e-4), "sigma mismatch (tight)"

    # Loose sanity check against the full-f32 PyTorch-equivalent forward.
    h_f32 = jnp.maximum(x @ w1 + b1, 0.0)
    assert jnp.allclose(mu, h_f32 @ w2 + b2, atol=5e-2), "mu far from f32 ref"
    assert jnp.allclose(sigma_sq, h_f32 @ w3 + b3, atol=5e-2), "sigma far from f32 ref"

    # Tiny-batch jnp fast path agrees with the kernel (same recipe).
    mu_f, sg_f = policy_forward(x, params)          # B=8 -> fused-jnp dispatch
    assert jnp.allclose(mu, mu_f, atol=1e-4) and jnp.allclose(sigma_sq, sg_f, atol=1e-4)

    # ---- 2) larger batch: nb=2 tiles (v7x dual-TC path), bf16 output slab ---
    xb = jax.random.normal(jax.random.PRNGKey(1), (272, num_inputs), jnp.float32)
    mu_b, sg_b = policy_forward(xb, params, out_dtype=jnp.bfloat16)
    jax.block_until_ready((mu_b, sg_b))
    mu_br, sg_br = _bf16_recipe_reference(xb, params)
    assert jnp.allclose(mu_b.astype(jnp.float32), mu_br, atol=2e-2), "large-B mu mismatch"
    assert jnp.allclose(sg_b.astype(jnp.float32), sg_br, atol=2e-2), "large-B sigma mismatch"

    # ---- 3) ragged batch: partial last tile handled via pl.cdiv grid --------
    xr = jax.random.normal(jax.random.PRNGKey(2), (270, num_inputs), jnp.float32)
    mu_r, sg_r = policy_forward(xr, params)
    jax.block_until_ready((mu_r, sg_r))
    mu_rr, sg_rr = _bf16_recipe_reference(xr, params)
    assert mu_r.shape == (270, num_outputs)
    assert jnp.allclose(mu_r, mu_rr, atol=1e-4), "ragged-B mu mismatch"
    assert jnp.allclose(sg_r, sg_rr, atol=1e-4), "ragged-B sigma mismatch"

    print("KERNEL_OK")
</pallas_src>

<mosaic_0001>
module attributes {stable_mosaic.version = 11 : i64} {
  func.func @_policy_kernel(%arg0: i32, %arg1: memref<8x16xf32, #tpu.memory_space<vmem>>, %arg2: memref<16x32xbf16, #tpu.memory_space<vmem>>, %arg3: memref<1x32xf32, #tpu.memory_space<vmem>>, %arg4: memref<32x128xbf16, #tpu.memory_space<vmem>>, %arg5: memref<1x128xf32, #tpu.memory_space<vmem>>, %arg6: memref<8x128xf32, #tpu.memory_space<vmem>>) attributes {dimension_semantics = [#tpu.dimension_semantics<parallel>], iteration_bounds = array<i64: 1>, scalar_prefetch = 0 : i64, scratch_operands = 0 : i64, tpu.core_type = #tpu.core_type<tc>, window_params = [{transform_indices = @transform_0, window_bounds = array<i64: 8, 16>}, {pipeline_mode = #tpu.pipeline_mode<synchronous>, transform_indices = @transform_1, window_bounds = array<i64: 16, 32>}, {pipeline_mode = #tpu.pipeline_mode<synchronous>, transform_indices = @transform_2, window_bounds = array<i64: 1, 32>}, {pipeline_mode = #tpu.pipeline_mode<synchronous>, transform_indices = @transform_3, window_bounds = array<i64: 32, 128>}, {pipeline_mode = #tpu.pipeline_mode<synchronous>, transform_indices = @transform_4, window_bounds = array<i64: 1, 128>}, {transform_indices = @transform_5, window_bounds = array<i64: 8, 128>}]} {
    %c0 = arith.constant 0 : index
    %c0_0 = arith.constant 0 : index
    %0 = vector.load %arg1[%c0, %c0_0] : memref<8x16xf32, #tpu.memory_space<vmem>>, vector<8x16xf32>
    %1 = arith.truncf %0 : vector<8x16xf32> to vector<8x16xbf16>
    %c0_1 = arith.constant 0 : index
    %c0_2 = arith.constant 0 : index
    %2 = vector.load %arg2[%c0_1, %c0_2] : memref<16x32xbf16, #tpu.memory_space<vmem>>, vector<16x32xbf16>
    %cst = arith.constant dense<0.000000e+00> : vector<8x32xf32>
    %3 = tpu.matmul %1, %2, %cst {dimension_numbers = #tpu.dot_dimension_numbers<[1], [0], [0], [1], [0, 0, 1, 1], [], []>} : vector<8x16xbf16>, vector<16x32xbf16>, vector<8x32xf32> -> vector<8x32xf32>
    %c0_3 = arith.constant 0 : index
    %c0_4 = arith.constant 0 : index
    %4 = vector.load %arg3[%c0_3, %c0_4] : memref<1x32xf32, #tpu.memory_space<vmem>>, vector<1x32xf32>
    %5 = vector.broadcast %4 : vector<1x32xf32> to vector<8x32xf32>
    %6 = arith.addf %3, %5 : vector<8x32xf32>
    %cst_5 = arith.constant 0.000000e+00 : f32
    %7 = vector.broadcast %cst_5 : f32 to vector<8x32xf32>
    %8 = arith.maximumf %6, %7 : vector<8x32xf32>
    %9 = arith.truncf %8 : vector<8x32xf32> to vector<8x32xbf16>
    %c0_6 = arith.constant 0 : index
    %c0_7 = arith.constant 0 : index
    %10 = vector.load %arg4[%c0_6, %c0_7] : memref<32x128xbf16, #tpu.memory_space<vmem>>, vector<32x128xbf16>
    %cst_8 = arith.constant dense<0.000000e+00> : vector<8x128xf32>
    %11 = tpu.matmul %9, %10, %cst_8 {dimension_numbers = #tpu.dot_dimension_numbers<[1], [0], [0], [1], [0, 0, 1, 1], [], []>} : vector<8x32xbf16>, vector<32x128xbf16>, vector<8x128xf32> -> vector<8x128xf32>
    %c0_9 = arith.constant 0 : index
    %c0_10 = arith.constant 0 : index
    %12 = vector.load %arg5[%c0_9, %c0_10] : memref<1x128xf32, #tpu.memory_space<vmem>>, vector<1x128xf32>
    %13 = vector.broadcast %12 : vector<1x128xf32> to vector<8x128xf32>
    %14 = arith.addf %11, %13 : vector<8x128xf32>
    %c0_11 = arith.constant 0 : index
    %c0_12 = arith.constant 0 : index
    %15 = vector.load %arg6[%c0_11, %c0_12] : memref<8x128xf32, #tpu.memory_space<vmem>>, vector<8x128xf32>
    tpu.vector_store %arg6[%c0_11, %c0_12], %14 {strides = array<i32>} : memref<8x128xf32, #tpu.memory_space<vmem>>, vector<8x128xf32>,
    return
  }
  func.func @transform_0(%arg0: i32) -> (i32, i32) {
    %c0_i32 = arith.constant 0 : i32
    %c0_i32_0 = arith.constant 0 : i32
    return %arg0, %c0_i32 : i32, i32
  }
  func.func @transform_1(%arg0: i32) -> (i32, i32) {
    %c0_i32 = arith.constant 0 : i32
    %c0_i32_0 = arith.constant 0 : i32
    %c0_i32_1 = arith.constant 0 : i32
    return %c0_i32, %c0_i32_0 : i32, i32
  }
  func.func @transform_2(%arg0: i32) -> (i32, i32) {
    %c0_i32 = arith.constant 0 : i32
    %c0_i32_0 = arith.constant 0 : i32
    %c0_i32_1 = arith.constant 0 : i32
    return %c0_i32, %c0_i32_0 : i32, i32
  }
  func.func @transform_3(%arg0: i32) -> (i32, i32) {
    %c0_i32 = arith.constant 0 : i32
    %c0_i32_0 = arith.constant 0 : i32
    %c0_i32_1 = arith.constant 0 : i32
    return %c0_i32, %c0_i32_0 : i32, i32
  }
  func.func @transform_4(%arg0: i32) -> (i32, i32) {
    %c0_i32 = arith.constant 0 : i32
    %c0_i32_0 = arith.constant 0 : i32
    %c0_i32_1 = arith.constant 0 : i32
    return %c0_i32, %c0_i32_0 : i32, i32
  }
  func.func @transform_5(%arg0: i32) -> (i32, i32) {
    %c0_i32 = arith.constant 0 : i32
    %c0_i32_0 = arith.constant 0 : i32
    return %arg0, %c0_i32 : i32, i32
  }
}

</mosaic_0001>

<llo_original>
// kernel: tpu_custom_call.1
$region0: #{tpu_custom_call.1}
  #allocation0 [shape = 'u32[]', space=smem, size = 0x4, offset = 0x4, fixed_abs, tag = 'smem constant byte address 0x4 - core index']
  #allocation1 [shape = 'u32[72,128]{1,0:T(1,128)}', space=vmem, size = 0x9000, scoped, tag = 'internal scratch']
  %s0 = inlined_call_operand.hbm [shape: f32[8,16], index: 0, kind: input, shape index: {}]
  %s1 = inlined_call_operand.hbm [shape: bf16[16,32], index: 1, kind: input, shape index: {}]
  %s2 = inlined_call_operand.vmem [shape: f32[1,32], index: 2, kind: input, shape index: {}]
  %s3 = inlined_call_operand.hbm [shape: bf16[32,128], index: 3, kind: input, shape index: {}]
  %s4 = inlined_call_operand.vmem [shape: f32[1,128], index: 4, kind: input, shape index: {}]
  %s5 = inlined_call_operand.hbm [shape: f32[8,128], index: 5, kind: output, shape index: {}]
  %s6 = sld [smem:[#allocation0]]
  $region42: #{tpu_custom_call.1} parent=0
    _
  %s8 = ssub.s32 1, %s6
  %s9 = scalar_select 0, %s8, %s6
  $region1: #{tpu_custom_call.1} parent=0
    #allocation2 [shape = 'u8[4096]{0}', space=vmem, size = 0x1000, scoped, tag = 'input window, operand 0, single buffered']
    #allocation3 [shape = 's32[1]{0}', space=sflag, size = 0x4, scoped, tag = 'scoped memory for tpu_custom_call.1']
    #allocation4 [shape = 's32[1]{0}', space=sflag, size = 0x4, scoped, tag = 'scoped memory for tpu_custom_call.1']
    #allocation5 [shape = 'u8[4096]{0}', space=vmem, size = 0x1000, scoped, tag = 'input window, operand 1, single buffered']
    #allocation6 [shape = 's32[1]{0}', space=sflag, size = 0x4, scoped, tag = 'scoped memory for tpu_custom_call.1']
    #allocation7 [shape = 'u8[8192]{0}', space=vmem, size = 0x2000, scoped, tag = 'input window, operand 3, single buffered']
    #allocation8 [shape = 'u8[4096]{0}', space=vmem, size = 0x1000, scoped, tag = 'output window, operand 0, single buffered']
    %10 = vsyncpa [#allocation3], 0
    %11 = vsyncpa [#allocation6], 0
    %12 = vsyncpa [#allocation4], 0
    // Predicated region
    $region2: #{tpu_custom_call.1} parent=1 // pred_check
      _
    $region3: #{tpu_custom_call.1} parent=1 // pred_check_branch
      %14 = sbr.rel (0) target = $region5
    $region4: #{tpu_custom_call.1} parent=1 // pred_region
      %16 = vsyncadd [#allocation3], 0
      %s18 = sshll.u32 %s0, 4
      %s19 = int_to_ptr.hbm [resolvable:$true] %s18
      %s20 = sshll.u32 [#allocation2], 4
      %s21 = int_to_ptr.vmem [resolvable:$true] %s20
      %23 = dma.hbm_to_vmem [thread:$0]  %s19, 128, %s21, [#allocation3]
    $region5: #{tpu_custom_call.1} parent=1 // pred_fallthru
      _
    // Predicated region
    $region6: #{tpu_custom_call.1} parent=1 // pred_check
      _
    $region7: #{tpu_custom_call.1} parent=1 // pred_check_branch
      %25 = sbr.rel (0) target = $region9
    $region8: #{tpu_custom_call.1} parent=1 // pred_region
      %27 = vsyncadd [#allocation6], 0
      %s28 = sshll.u32 %s1, 4
      %s29 = int_to_ptr.hbm [resolvable:$true] %s28
      %s30 = sshll.u32 [#allocation5], 4
      %s31 = int_to_ptr.vmem [resolvable:$true] %s30
      %36 = dma.hbm_to_vmem [thread:$0]  %s29, 128, %s31, [#allocation6], 64, 64, 4
    $region9: #{tpu_custom_call.1} parent=1 // pred_fallthru
      _
    // Predicated region
    $region10: #{tpu_custom_call.1} parent=1 // pred_check
      _
    $region11: #{tpu_custom_call.1} parent=1 // pred_check_branch
      %38 = sbr.rel (0) target = $region13
    $region12: #{tpu_custom_call.1} parent=1 // pred_region
      _
    $region13: #{tpu_custom_call.1} parent=1 // pred_fallthru
      _
    // Predicated region
    $region14: #{tpu_custom_call.1} parent=1 // pred_check
      _
    $region15: #{tpu_custom_call.1} parent=1 // pred_check_branch
      %40 = sbr.rel (0) target = $region17
    $region16: #{tpu_custom_call.1} parent=1 // pred_region
      %42 = vsyncadd [#allocation6], 0
      %s43 = sshll.u32 %s3, 4
      %s44 = int_to_ptr.hbm [resolvable:$true] %s43
      %s45 = sshll.u32 [#allocation7], 4
      %s46 = int_to_ptr.vmem [resolvable:$true] %s45
      %51 = dma.hbm_to_vmem [thread:$0]  %s44, 256, %s46, [#allocation6], 64, 64, 4
    $region17: #{tpu_custom_call.1} parent=1 // pred_fallthru
      _
    // Predicated region
    $region18: #{tpu_custom_call.1} parent=1 // pred_check
      _
    $region19: #{tpu_custom_call.1} parent=1 // pred_check_branch
      %53 = sbr.rel (0) target = $region21
    $region20: #{tpu_custom_call.1} parent=1 // pred_region
      _
    $region21: #{tpu_custom_call.1} parent=1 // pred_fallthru
      _
    // Predicated region
    $region22: #{tpu_custom_call.1} parent=1 // pred_check
      _
    $region23: #{tpu_custom_call.1} parent=1 // pred_check_branch
      %55 = sbr.rel (0) target = $region25
    $region24: #{tpu_custom_call.1} parent=1 // pred_region
      %57 = dma.done [#allocation3], 128
    $region25: #{tpu_custom_call.1} parent=1 // pred_fallthru
      _
    // Predicated region
    $region26: #{tpu_custom_call.1} parent=1 // pred_check
      _
    $region27: #{tpu_custom_call.1} parent=1 // pred_check_branch
      %59 = sbr.rel (0) target = $region29
    $region28: #{tpu_custom_call.1} parent=1 // pred_region
      %61 = dma.done [#allocation6], 128
    $region29: #{tpu_custom_call.1} parent=1 // pred_fallthru
      _
    // Predicated region
    $region30: #{tpu_custom_call.1} parent=1 // pred_check
      _
    $region31: #{tpu_custom_call.1} parent=1 // pred_check_branch
      %63 = sbr.rel (0) target = $region33
    $region32: #{tpu_custom_call.1} parent=1 // pred_region
      %65 = dma.done [#allocation6], 256
    $region33: #{tpu_custom_call.1} parent=1 // pred_fallthru
      _
    %v67 = vld [vmem:[#allocation2] sm:$0xff]
    %v68 = vpack.c.bf16 %v67, %v67
    %v69 = vld [vmem:[#allocation5] sm:$0xf]
    %v70 = vld [vmem:[#allocation5 + $0x4] sm:$0xf]
    %v71 = vld [vmem:[%s2] sm:$0x1]
    %v73 = vperm.slane %v71, 0
    %v77 = vunpack.c.l.b16 %v69
    %v78 = vunpack.c.l.b16 %v70
    %v79 = vpack.c.b16 %v78, %v77
    %vm81 = vcmask 130048
    %v83 = vsel %vm81, %v68, 0
    %85 = vmatpush.bf16.msra.mxu0 0
    %86 = vmatpush.bf16.msra.mxu0 0
    %87 = vmatpush.bf16.msra.mxu0 0
    %88 = vmatpush.bf16.msra.mxu0 0
    %89 = vmatpush.bf16.msra.mxu0 0
    %90 = vmatpush.bf16.msra.mxu0 0
    %91 = vmatpush.bf16.msra.mxu0 0
    %92 = vmatpush.bf16.msra.mxu0 %v79
    %93 = vmatmul.bf16.gmra.mxu0 %v83
    %v94 = vpop.f32.mrf.mxu0
    %v95 = vadd.f32 %v73, %v94
    %v96 = vpop.f32.mrf.mxu0
    %97 = vdwg.mxu0
    %v98 = vmax.f32 %v95, 0.0
    %v99 = vpack.c.bf16 %v98, %v98
    %v100 = vld [vmem:[#allocation7] sm:$0xf]
    %v101 = vld [vmem:[#allocation7 + $0x4] sm:$0xf]
    %v102 = vld [vmem:[#allocation7 + $0x8] sm:$0xf]
    %v103 = vld [vmem:[#allocation7 + $0xc] sm:$0xf]
    %v104 = vld [vmem:[%s4] sm:$0x1]
    %v106 = vperm.slane %v104, 0
    %v112 = vunpack.c.l.b16 %v100
    %v113 = vunpack.c.l.b16 %v101
    %v114 = vunpack.c.l.b16 %v102
    %v115 = vunpack.c.l.b16 %v103
    %v116 = vpack.c.b16 %v113, %v112
    %v117 = vpack.c.b16 %v115, %v114
    %vm120 = vcmask 261120
    %v122 = vsel %vm120, %v99, 0
    %124 = vmatpush.bf16.msra.mxu0 0
    %125 = vmatpush.bf16.msra.mxu0 0
    %126 = vmatpush.bf16.msra.mxu0 0
    %127 = vmatpush.bf16.msra.mxu0 0
    %128 = vmatpush.bf16.msra.mxu0 0
    %129 = vmatpush.bf16.msra.mxu0 0
    %130 = vmatpush.bf16.msra.mxu0 %v117
    %131 = vmatpush.bf16.msra.mxu0 %v116
    %132 = vmatmul.bf16.gmra.mxu0 %v122
    %v133 = vpop.f32.mrf.mxu0
    %v134 = vadd.f32 %v106, %v133
    %v135 = vpop.f32.mrf.mxu0
    %136 = vdwg.mxu0
    %137 = vst [vmem:[#allocation8] sm:$0xff] %v134
    // Predicated region
    $region34: #{tpu_custom_call.1} parent=1 // pred_check
      _
    $region35: #{tpu_custom_call.1} parent=1 // pred_check_branch
      %139 = sbr.rel (0) target = $region37
    $region36: #{tpu_custom_call.1} parent=1 // pred_region
      %141 = vsyncadd [#allocation4], 0
      %s143 = sshll.u32 [#allocation8], 4
      %s144 = int_to_ptr.vmem [resolvable:$true] %s143
      %s145 = sshll.u32 %s5, 4
      %s146 = int_to_ptr.hbm [resolvable:$true] %s145
      %148 = dma.vmem_to_hbm [thread:$0]  %s144, 128, %s146, [#allocation4]
    $region37: #{tpu_custom_call.1} parent=1 // pred_fallthru
      _
    // Predicated region
    $region38: #{tpu_custom_call.1} parent=1 // pred_check
      _
    $region39: #{tpu_custom_call.1} parent=1 // pred_check_branch
      %150 = sbr.rel (0) target = $region41
    $region40: #{tpu_custom_call.1} parent=1 // pred_region
      %152 = dma.done [#allocation4], 128
    $region41: #{tpu_custom_call.1} parent=1 // pred_fallthru
      _
    %153 = vsyncpa [#allocation3], 1
    %154 = vsyncpa [#allocation6], 1
    %155 = vsyncpa [#allocation4], 1

</llo_original>
